<compile_context>
chip_gen: v5e
topology: v5e:2x2
jax: 0.10.0
libtpu: 0.0.40
codegen_flags: <defaults>
</compile_context>

<pallas_src>
import math
import functools

import jax
import jax.numpy as jnp
from jax import lax
from jax.experimental import pallas as pl
from jax.experimental.pallas import tpu as pltpu


DROPOUT_P = 0.0                      # torch.nn.Dropout(0.0) == identity
LANE = 128                           # lane width
SUB = 8                              # sublane width
TARGET_BLOCK_BYTES = 4 * 1024 * 1024 # ~4 MiB output blocks (ok on v5e/v6e/v7x)


def _fill_kernel(vt_ref, o_ref, *, m):
    """Write result[n, j, m2, 0] = sum_p softmax(v)[p] into the output block.

    vt_ref: (8, MP) f32 resident tile; row 0 lanes [0, m) hold value^T.
    o_ref : (TBN, TBJ, M, 1) f32 output block (final logical layout).
    """
    row = vt_ref[0:1, :]                                   # single sublane only
    lane = lax.broadcasted_iota(jnp.int32, row.shape, 1)
    valid = lane < m

    # masked softmax over the real M lanes
    x = jnp.where(valid, row, -1e30)
    mx = jnp.max(x, axis=-1, keepdims=True)
    e = jnp.where(valid, jnp.exp(x - mx), 0.0)
    c = e / jnp.sum(e, axis=-1, keepdims=True)             # softmax_p(v)

    # result is the same scalar everywhere (attention weights are exactly 1).
    s = jnp.sum(c)                                         # ≈ 1
    o_ref[...] = jnp.full(o_ref.shape, s, o_ref.dtype)


def _choose_blocks(n, m):
    """Pick (tbn, tbj) output-block chunks of the (n, j) axes."""
    per_n_bytes = m * m * 4
    if per_n_bytes > TARGET_BLOCK_BYTES:
        tbn = 1
        tbj = max(1, min(m, TARGET_BLOCK_BYTES // (m * 4)))
    else:
        tbn = min(n, max(1, TARGET_BLOCK_BYTES // per_n_bytes))
        tbj = m
    # v7x has 2 TensorCores sharded over parallel grid axes: ensure >= 2 steps.
    if n >= 2 and pl.cdiv(n, tbn) < 2:
        tbn = pl.cdiv(n, 2)
    grid_n = pl.cdiv(n, tbn)
    if grid_n < 2 and tbj == m and m >= 2:
        tbj = pl.cdiv(m, 2)          # N too small -> split the j axis instead
    grid_j = pl.cdiv(m, tbj)
    return tbn, tbj, grid_n, grid_j


def model_forward(query, key, value):
    q = query.reshape(-1, query.shape[-1]).astype(jnp.float32)  # (M, D)
    k = key.reshape(-1, key.shape[-1]).astype(jnp.float32)      # (N, D)
    v = value.reshape(-1, value.shape[-1]).astype(jnp.float32)  # (M, 1)

    M, D = q.shape
    N, Dk = k.shape
    P, Dv = v.shape
    if Dk != D:
        raise ValueError("query/key feature dims must match")
    if Dv != 1 or P != M:
        raise ValueError("torch forward is only well-defined for value reshaped to (M, 1)")

    # q/k only feed a softmax over a size-1 axis (identically 1 for any finite
    # input and scale); with dropout_p == 0 they cannot affect the output, so
    # no Q.K^T matmul is performed (inputs are shape-validated above only).

    MP = max(LANE, pl.cdiv(M, LANE) * LANE)

    # value^T, lane-dense, in a single (8, MP) resident VMEM tile (row 0 = data)
    vt = jnp.zeros((SUB, MP), jnp.float32).at[0, :M].set(v[:, 0])

    tbn, tbj, grid_n, grid_j = _choose_blocks(N, M)
    block_bytes = tbn * tbj * M * 4
    vmem_limit = int(min(64 * 1024 * 1024,
                         max(16 * 1024 * 1024,
                             2 * block_bytes + 2 * SUB * MP * 4 + (1 << 20))))

    out = pl.pallas_call(
        functools.partial(_fill_kernel, m=M),
        # final logical shape -> no post-kernel slice/reshape copy
        out_shape=jax.ShapeDtypeStruct((N, M, M, 1), jnp.float32),
        grid=(grid_n, grid_j),
        in_specs=[
            pl.BlockSpec((SUB, MP), lambda n, j: (0, 0)),        # resident v^T block
        ],
        out_specs=pl.BlockSpec((tbn, tbj, M, 1), lambda n, j: (n, j, 0, 0)),
        compiler_params=pltpu.CompilerParams(
            dimension_semantics=("parallel", "parallel"),
            vmem_limit_bytes=vmem_limit),
    )(vt)

    # torch: reshape(result, (-1, result.shape[1], *result.shape[2:])) -> no-op here
    return out


def reference_forward(query, key, value):
    """Pure-JAX mirror of the torch forward (dropout_p = 0)."""
    q = query.reshape(-1, query.shape[-1])
    k = key.reshape(-1, key.shape[-1])
    v = value.reshape(-1, value.shape[-1])
    k_u = k[:, None, :]                                              # unsqueeze(-2)
    qk = jnp.matmul(q, jnp.swapaxes(k_u, -2, -1)) / math.sqrt(k.shape[-1])
    dropout_qk = jax.nn.softmax(qk, axis=-1)                         # (N, M, 1)
    dropout_val = v
    i1 = dropout_qk[:, :, None, :]                                   # (N, M, 1, 1)
    i3 = dropout_qk[:, None, :, :]                                   # (N, 1, M, 1)
    a = jnp.matmul(i1, jnp.swapaxes(dropout_val, -2, -1))            # (N, M, 1, M)
    b = a / i3                                                       # (N, M, M, M)
    c = jax.nn.softmax(b, axis=-1)
    res = jnp.matmul(c, i3)                                          # (N, M, M, 1)
    return res.reshape(-1, res.shape[1], res.shape[2], res.shape[3])


if __name__ == "__main__":
    root = jax.random.PRNGKey(0)
    kq, kk, kv = jax.random.split(root, 3)
    query = jax.random.normal(kq, (2, 10), dtype=jnp.float32)
    key = jax.random.normal(kk, (1, 10), dtype=jnp.float32)
    value = jax.random.normal(kv, (2, 1), dtype=jnp.float32)

    out = model_forward(query, key, value)
    jax.block_until_ready(out)

    ref = reference_forward(query, key, value)
    assert out.shape == ref.shape, (out.shape, ref.shape)
    assert jnp.allclose(out, ref, atol=1e-5, rtol=1e-5)
    print("KERNEL_OK")
</pallas_src>

<mosaic_0001>
module attributes {stable_mosaic.version = 11 : i64} {
  func.func @_fill_kernel(%arg0: i32, %arg1: i32, %arg2: memref<8x128xf32, #tpu.memory_space<vmem>>, %arg3: memref<1x1x2x1xf32, #tpu.memory_space<vmem>>) attributes {dimension_semantics = [#tpu.dimension_semantics<parallel>, #tpu.dimension_semantics<parallel>], iteration_bounds = array<i64: 1, 2>, scalar_prefetch = 0 : i64, scratch_operands = 0 : i64, tpu.core_type = #tpu.core_type<tc>, window_params = [{pipeline_mode = #tpu.pipeline_mode<synchronous>, transform_indices = @transform_0, window_bounds = array<i64: 8, 128>}, {transform_indices = @transform_1, window_bounds = array<i64: 1, 1, 2, 1>}]} {
    %c0 = arith.constant 0 : index
    %c0_0 = arith.constant 0 : index
    %0 = vector.load %arg2[%c0, %c0_0] : memref<8x128xf32, #tpu.memory_space<vmem>>, vector<1x128xf32>
    %1 = tpu.iota {dimensions = array<i32: 1>} : vector<1x128xi32>
    %c2_i32 = arith.constant 2 : i32
    %2 = vector.broadcast %c2_i32 : i32 to vector<1x128xi32>
    %3 = arith.cmpi slt, %1, %2 : vector<1x128xi32>
    %cst = arith.constant -1.000000e+30 : f32
    %4 = vector.broadcast %cst : f32 to vector<1x128xf32>
    %5 = arith.select %3, %0, %4 : vector<1x128xi1>, vector<1x128xf32>
    %cst_1 = arith.constant dense<0xFF800000> : vector<1xf32>
    %6 = vector.multi_reduction <maximumf>, %5, %cst_1 [1] : vector<1x128xf32> to vector<1xf32>
    %7 = vector.shape_cast %6 : vector<1xf32> to vector<1x1xf32>
    %8 = vector.broadcast %7 : vector<1x1xf32> to vector<1x128xf32>
    %9 = arith.subf %5, %8 : vector<1x128xf32>
    %10 = math.exp %9 : vector<1x128xf32>
    %cst_2 = arith.constant 0.000000e+00 : f32
    %11 = vector.broadcast %cst_2 : f32 to vector<1x128xf32>
    %12 = arith.select %3, %10, %11 : vector<1x128xi1>, vector<1x128xf32>
    %cst_3 = arith.constant dense<0.000000e+00> : vector<1xf32>
    %13 = vector.multi_reduction <add>, %12, %cst_3 [1] : vector<1x128xf32> to vector<1xf32>
    %14 = vector.shape_cast %13 : vector<1xf32> to vector<1x1xf32>
    %15 = vector.broadcast %14 : vector<1x1xf32> to vector<1x128xf32>
    %16 = arith.divf %12, %15 : vector<1x128xf32>
    %17 = vector.shape_cast %16 : vector<1x128xf32> to vector<1x1x128xf32>
    %cst_4 = arith.constant dense<0.000000e+00> : vector<1xf32>
    %18 = vector.multi_reduction <add>, %17, %cst_4 [1, 2] : vector<1x1x128xf32> to vector<1xf32>
    %19 = vector.shape_cast %18 : vector<1xf32> to vector<1x1x1xf32>
    %20 = vector.extract %19[0, 0, 0] : f32 from vector<1x1x1xf32>
    %21 = vector.broadcast %20 : f32 to vector<1x1x2x1xf32>
    %c0_5 = arith.constant 0 : index
    %c0_6 = arith.constant 0 : index
    %c0_7 = arith.constant 0 : index
    %c0_8 = arith.constant 0 : index
    %22 = vector.load %arg3[%c0_5, %c0_6, %c0_7, %c0_8] : memref<1x1x2x1xf32, #tpu.memory_space<vmem>>, vector<1x1x2x1xf32>
    tpu.vector_store %arg3[%c0_5, %c0_6, %c0_7, %c0_8], %21 {strides = array<i32>} : memref<1x1x2x1xf32, #tpu.memory_space<vmem>>, vector<1x1x2x1xf32>,
    return
  }
  func.func @transform_0(%arg0: i32, %arg1: i32) -> (i32, i32) {
    %c0_i32 = arith.constant 0 : i32
    %c0_i32_0 = arith.constant 0 : i32
    %c0_i32_1 = arith.constant 0 : i32
    return %c0_i32, %c0_i32_0 : i32, i32
  }
  func.func @transform_1(%arg0: i32, %arg1: i32) -> (i32, i32, i32, i32) {
    %c0_i32 = arith.constant 0 : i32
    %c0_i32_0 = arith.constant 0 : i32
    %c0_i32_1 = arith.constant 0 : i32
    return %arg0, %arg1, %c0_i32, %c0_i32_0 : i32, i32, i32, i32
  }
}

</mosaic_0001>

<llo_original>
// kernel: tpu_custom_call.1
$region0: #{tpu_custom_call.1}
  #allocation0 [shape = 'u32[]', space=smem, size = 0x4, offset = 0x4, fixed_abs, tag = 'smem constant byte address 0x4 - core index']
  #allocation1 [shape = 'u32[72,128]{1,0:T(1,128)}', space=vmem, size = 0x9000, scoped, tag = 'internal scratch']
  %s0 = inlined_call_operand.hbm [shape: f32[8,128], index: 0, kind: input, shape index: {}]
  %s1 = inlined_call_operand.vmem [shape: f32[1,2,2,1], index: 1, kind: output, shape index: {}]
  %s2 = sld [smem:[#allocation0]]
  $region41: #{tpu_custom_call.1} parent=0
    _
  %s4 = ssub.s32 1, %s2
  %s5 = scalar_select 0, %s4, %s2
  $region1: #{tpu_custom_call.1} parent=0
    #allocation2 [shape = 'u8[4096]{0}', space=vmem, size = 0x1000, scoped, tag = 'input window, operand 0, single buffered']
    #allocation3 [shape = 's32[2]{0}', space=sflag, size = 0x8, scoped, tag = 'scoped memory for tpu_custom_call.1']
    %6 = vsyncpa [#allocation3], 0
    loop: start=0, step=1, limit=4
    $region2: #{tpu_custom_call.1} parent=1 // loop_pre_header
      _
    $region3: #{tpu_custom_call.1} parent=1 // loop_header
      %s8 = sphi 0, %s12
      %p9 = scmp.ge.s32.totalorder %s8, 4
      %s15 = sphi 0, %s27
      %s16 = sphi 0, %s23
      %s17 = sphi 0, %s15
      %s18 = sphi 0, %s16
      %s19 = sphi 0, %s17
      %s20 = sphi 0, %s18
      %s28 = sphi 0, %s28
      %s30 = sphi 0, %s28
      %s31 = sphi 0, %s30
      %s45 = sphi 0, %s31
      %s53 = sphi 0, %s55
      %s56 = sphi 0, %s53
      %s57 = sphi 0, %s56
      %s73 = sphi 0, %s57
    $region4: #{tpu_custom_call.1} parent=1 // loop_header_branch
      %11 = sbr.rel (%p9) target = $region8
    $region5: #{tpu_custom_call.1} parent=1 // loop_body
      %s13 = ssub.s32 %s8, 1
      %s14 = ssub.s32 %s8, 2
      %s21 = sadd.s32 1, %s16
      %p22 = scmp.ge.s32.totalorder %s21, 2
      %s23 = scalar_select %p22, 0, %s21
      %s24 = sadd.s32 1, %s15
      %s25 = scalar_select %p22, %s24, %s15
      %p26 = scmp.ge.s32.totalorder %s25, 1
      %s27 = scalar_select %p26, 0, %s25
      %s29 = sadd.s32 %s28, 1
      %p32 = scmp.eq.s32.totalorder %s8, 1
      %p33 = scmp.ne.s32.totalorder %s28, %s30
      %p34 = scmp.eq.s32.totalorder %s8, 0
      %p35 = por %p33, %p34
      %p36 = scmp.ne.s32.totalorder %s28, %s30
      %p37 = scmp.eq.s32.totalorder %s13, 1
      %p38 = por %p36, %p37
      %p39 = scmp.ne.s32.totalorder %s30, %s31
      %p40 = scmp.eq.s32.totalorder %s13, 0
      %p41 = por %p39, %p40
      %p42 = scmp.ne.s32.totalorder %s30, %s31
      %p43 = scmp.eq.s32.totalorder %s14, 1
      %p44 = por %p42, %p43
      %p46 = scmp.ne.s32.totalorder %s31, %s45
      %p47 = scmp.eq.s32.totalorder %s14, 0
      %p48 = por %p46, %p47
      %s49 = ssub.s32 %s15, %s27
      %s50 = ssub.s32 %s16, %s23
      %s51 = sor.u32 %s49, %s50
      %p52 = scmp.eq.s32.totalorder %s51, 0
      %s54 = sadd.s32 %s53, 1
      %s55 = scalar_select %p52, %s53, %s54
      %p58 = pneg %p52
      %p59 = scmp.eq.s32.totalorder %s8, 1
      %p60 = por %p58, %p59
      %p61 = scmp.ne.s32.totalorder %s53, %s56
      %p62 = scmp.eq.s32.totalorder %s8, 0
      %p63 = por %p61, %p62
      %p64 = scmp.ne.s32.totalorder %s53, %s56
      %p65 = scmp.eq.s32.totalorder %s13, 1
      %p66 = por %p64, %p65
      %p67 = scmp.ne.s32.totalorder %s56, %s57
      %p68 = scmp.eq.s32.totalorder %s13, 0
      %p69 = por %p67, %p68
      %p70 = scmp.ne.s32.totalorder %s56, %s57
      %p71 = scmp.eq.s32.totalorder %s14, 1
      %p72 = por %p70, %p71
      %p74 = scmp.ne.s32.totalorder %s57, %s73
      %p75 = scmp.eq.s32.totalorder %s14, 0
      %p76 = por %p74, %p75
      %p77 = scmp.le.s32.totalorder 1, %s8
      %p78 = scmp.lt.s32.totalorder %s8, 3
      %p79 = pnand %p77, %p78
      %p80 = pneg %p79
      // Predicated region
      $region9: #{tpu_custom_call.1} parent=5 // pred_check
        _
      $region10: #{tpu_custom_call.1} parent=5 // pred_check_branch
        %82 = sbr.rel (%p79) target = $region12
      $region11: #{tpu_custom_call.1} parent=5 // pred_region
        %s83 = ssub.s32 %s8, 1
        // Predicated region
        $region13: #{tpu_custom_call.1} parent=11 // pred_check
          %p84 = pneg %p41
        $region14: #{tpu_custom_call.1} parent=11 // pred_check_branch
          %86 = sbr.rel (%p84) target = $region16
        $region15: #{tpu_custom_call.1} parent=11 // pred_region
          %88 = vsyncadd [#allocation3], 0
          %s90 = sshll.u32 %s0, 4
          %s91 = int_to_ptr.hbm [resolvable:$true] %s90
          %s92 = sshll.u32 [#allocation2], 4
          %s93 = int_to_ptr.vmem [resolvable:$true] %s92
          %95 = dma.hbm_to_vmem [thread:$0]  %s91, 128, %s93, [#allocation3]
        $region16: #{tpu_custom_call.1} parent=11 // pred_fallthru
          _
      $region12: #{tpu_custom_call.1} parent=5 // pred_fallthru
        _
      %p96 = scmp.lt.s32.totalorder %s8, 2
      // Predicated region
      $region17: #{tpu_custom_call.1} parent=5 // pred_check
        %p97 = pneg %p96
      $region18: #{tpu_custom_call.1} parent=5 // pred_check_branch
        %99 = sbr.rel (%p97) target = $region20
      $region19: #{tpu_custom_call.1} parent=5 // pred_region
        _
      $region20: #{tpu_custom_call.1} parent=5 // pred_fallthru
        _
      %p100 = scmp.le.s32.totalorder 1, %s8
      %p101 = scmp.lt.s32.totalorder %s8, 3
      %p102 = pnand %p100, %p101
      %p103 = pneg %p102
      // Predicated region
      $region21: #{tpu_custom_call.1} parent=5 // pred_check
        _
      $region22: #{tpu_custom_call.1} parent=5 // pred_check_branch
        %105 = sbr.rel (%p102) target = $region24
      $region23: #{tpu_custom_call.1} parent=5 // pred_region
        %s106 = ssub.s32 %s8, 1
        // Predicated region
        $region25: #{tpu_custom_call.1} parent=23 // pred_check
          %p107 = pneg %p41
        $region26: #{tpu_custom_call.1} parent=23 // pred_check_branch
          %109 = sbr.rel (%p107) target = $region28
        $region27: #{tpu_custom_call.1} parent=23 // pred_region
          %111 = dma.done [#allocation3], 128
        $region28: #{tpu_custom_call.1} parent=23 // pred_fallthru
          _
        %p112 = pneg %p41
        %p113 = pneg %p38
        %p114 = pneg %p69
        %p115 = pneg %p66
        %p116 = scmp.lt.s32.totalorder %s17, 0
        %s117 = scalar_select %p116, %s17, 0
        %p118 = scmp.lt.s32.totalorder %s18, 1
        %s119 = scalar_select %p118, %s18, 1
        %s120 = smul.addr %s117, 2
        %s121 = sadd.s32 %s119, %s120
        %s122 = smul.addr %s121, 2
        %s123 = scalar_lea.vmem %s1, %s122
        %p124 = scmp.lt.s32.totalorder %s17, 0
        %s125 = scalar_select %p124, %s17, 0
        %p126 = scmp.lt.s32.totalorder %s18, 1
        %s127 = scalar_select %p126, %s18, 1
        %s128 = smul.addr %s125, 2
        %s129 = sadd.s32 %s127, %s128
        %s130 = smul.addr %s129, 2
        %s131 = scalar_lea.vmem %s1, %s130
        %v132 = vld [vmem:[#allocation2] sm:$0x1]
        %v133 = vlaneseq
        %v134 = vand.u32 %v133, 127
        %vm135 = vcmp.lt.s32.totalorder %v134, 2
        %v136 = vsel %vm135, %v132, -1e+30
        %vm137 = vcmask 1040384
        %v138 = vsel %vm137, %v136, -inf
        %139 = vmax.xlane.f32.xlu0 %v138
        %v140 = vpop.xlane.xlu0 %139
        %v141 = vsub.f32 %v136, %v140
        %v142 = vmul.f32 %v141, 1.442695
        %v143 = vpow.pop %v142
        %v144 = vsel %vm135, %v143, 0.0
        %v145 = vsel %vm137, %v144, 0.0
        %146 = vadd.xlane.f32.xlu0 %v145
        %v147 = vpop.xlane.xlu0 %146
        %v148 = vrcp.pop %v147
        %v149 = vmul.f32 %v147, %v148
        %v150 = vsub.f32 1.0, %v149
        %v151 = vmul.f32 %v148, %v150
        %v152 = vadd.f32 %v148, %v151
        %vm153 = vweird.f32 %v147
        %vm154 = vweird.f32 %v148
        %vm155 = vmor %vm153, %vm154
        %v156 = vsel %vm155, %v148, %v152
        %v157 = vand.u32 2147483647, %v147
        %vm158 = vcmp.eq.f32.partialorder %v157, 8.507059e+37
        %v159 = vand.u32 %v147, 2147483648
        %v160 = vor.u32 1.1754944e-38, %v159
        %v161 = vsel %vm158, %v160, %v156
        %v162 = vmul.f32 %v144, %v161
        %v163 = vsel %vm137, %v162, 0.0
        %164 = vadd.xlane.f32.xlu0 %v163
        %v165 = vpop.xlane.xlu0 %164
        %v166 = vrot.slane %v165, 4
        %v167 = vadd.f32 %v165, %v166
        %v168 = vrot.slane %v167, 2
        %v169 = vadd.f32 %v167, %v168
        %v170 = vrot.slane %v169, 1
        %v171 = vadd.f32 %v169, %v170
        %s172 = vtos %v171
        %v173 = vstv %s172
        %vm174 = vcmask 1024
        %175 = vst.msk [vmem:[%s131] sm:$0x3] %vm174, %v173
        %p176 = scmp.lt.s32.totalorder %s17, 0
        %s177 = scalar_select %p176, %s17, 0
        %p178 = scmp.lt.s32.totalorder %s18, 1
        %s179 = scalar_select %p178, %s18, 1
        %s180 = smul.addr %s177, 2
        %s181 = sadd.s32 %s179, %s180
        %s182 = smul.addr %s181, 2
        %s183 = scalar_lea.vmem %s1, %s182
        // Predicated region
        $region29: #{tpu_custom_call.1} parent=23 // pred_check
          %p184 = pneg %p66
        $region30: #{tpu_custom_call.1} parent=23 // pred_check_branch
          %186 = sbr.rel (%p184) target = $region32
        $region31: #{tpu_custom_call.1} parent=23 // pred_region
          _
        $region32: #{tpu_custom_call.1} parent=23 // pred_fallthru
          _
      $region24: #{tpu_custom_call.1} parent=5 // pred_fallthru
        _
      %p187 = scmp.le.s32.totalorder 2, %s8
      // Predicated region
      $region33: #{tpu_custom_call.1} parent=5 // pred_check
        %p188 = pneg %p187
      $region34: #{tpu_custom_call.1} parent=5 // pred_check_branch
        %190 = sbr.rel (%p188) target = $region36
      $region35: #{tpu_custom_call.1} parent=5 // pred_region
        %s191 = ssub.s32 %s8, 2
        // Predicated region
        $region37: #{tpu_custom_call.1} parent=35 // pred_check
          %p192 = pneg %p72
        $region38: #{tpu_custom_call.1} parent=35 // pred_check_branch
          %194 = sbr.rel (%p192) target = $region40
        $region39: #{tpu_custom_call.1} parent=35 // pred_region
          %p195 = scmp.lt.s32.totalorder %s19, 0
          %s196 = scalar_select %p195, %s19, 0
          %p197 = scmp.lt.s32.totalorder %s20, 1
          %s198 = scalar_select %p197, %s20, 1
          %s199 = smul.addr %s196, 2
          %s200 = sadd.s32 %s198, %s199
          %s201 = smul.addr %s200, 2
          %s202 = scalar_lea.vmem %s1, %s201
        $region40: #{tpu_custom_call.1} parent=35 // pred_fallthru
          _
      $region36: #{tpu_custom_call.1} parent=5 // pred_fallthru
        _
    $region6: #{tpu_custom_call.1} parent=1 // loop_footer
      %s12 = sadd.s32 1, %s8
    $region7: #{tpu_custom_call.1} parent=1 // loop_footer_branch
      %7 = sbr.rel target = $region3
    $region8: #{tpu_custom_call.1} parent=1 // loop_exit
      _
    %203 = vsyncpa [#allocation3], 1
    %s204 = scalar_lea.sflag [#allocation3], 1
    %205 = vsyncpa %s204, 1

</llo_original>
